<compile_context>
chip_gen: v7x
topology: tpu7x:2x2x1
jax: 0.10.0
libtpu: 0.0.40
codegen_flags: <defaults>
</compile_context>

<pallas_src>
import jax
import jax.numpy as jnp
from jax.experimental import pallas as pl
from jax.experimental.pallas import tpu as pltpu


def _round_up(x, m):
    return ((x + m - 1) // m) * m


def _cdiv(a, b):
    return -(-a // b)


# ----------------------------------------------------------------------------
# Kernels
# ----------------------------------------------------------------------------
def _ffn_kernel_scratch(x_ref, w13_ref, b13_ref, w2_ref, b2_ref, o_ref, acc_ref):
    """Accumulate in a f32 VMEM scratch; used when the output dtype is not f32."""
    d = pl.program_id(1)
    td = w2_ref.shape[0]                                 # static chunk width

    @pl.when(d == 0)
    def _init():
        # Fold the w2 bias into the accumulator init (one broadcast, no per-step add).
        acc_ref[...] = jnp.broadcast_to(b2_ref[...].astype(jnp.float32), acc_ref.shape)

    x = x_ref[...]                                        # (tm, H_pad) bf16
    # Fused w1|w3 projection: one MXU matmul, f32 accumulation, biases in f32.
    h = jnp.dot(x, w13_ref[...], preferred_element_type=jnp.float32) + b13_ref[...]
    h1 = h[:, :td]
    h3 = h[:, td:]
    g = (h1 * jax.nn.sigmoid(h1) * h3).astype(w2_ref.dtype)   # bf16 for the MXU
    acc_ref[...] += jnp.dot(g, w2_ref[...], preferred_element_type=jnp.float32)

    @pl.when(d == pl.num_programs(1) - 1)
    def _finalize():
        o_ref[...] = acc_ref[...].astype(o_ref.dtype)


def _ffn_kernel_direct(x_ref, w13_ref, b13_ref, w2_ref, b2_ref, o_ref):
    """Accumulate directly into the (f32) output block; no duplicate scratch."""
    d = pl.program_id(1)
    td = w2_ref.shape[0]

    @pl.when(d == 0)
    def _init():
        o_ref[...] = jnp.broadcast_to(b2_ref[...].astype(jnp.float32), o_ref.shape)

    x = x_ref[...]
    h = jnp.dot(x, w13_ref[...], preferred_element_type=jnp.float32) + b13_ref[...]
    h1 = h[:, :td]
    h3 = h[:, td:]
    g = (h1 * jax.nn.sigmoid(h1) * h3).astype(w2_ref.dtype)
    o_ref[...] += jnp.dot(g, w2_ref[...], preferred_element_type=jnp.float32)


# ----------------------------------------------------------------------------
# VMEM budgeting
# ----------------------------------------------------------------------------
def _vmem_caps():
    """(scoped vmem limit to request, tile-footprint budget) in bytes."""
    phys = 0
    try:
        phys = int(getattr(pltpu.get_tpu_info(), "vmem_capacity_bytes", 0) or 0)
    except Exception:
        phys = 0
    if phys <= 0:
        phys = 64 * 1024 * 1024            # conservative fallback (v7x-sized)
    limit = min(int(phys * 0.9), 112 * 1024 * 1024)
    budget = int(limit * 0.8)              # headroom for Mosaic internal scratch
    return limit, budget


# ----------------------------------------------------------------------------
# One-time parameter preparation (pad, cast, fuse w1|w3 per D-chunk)
# ----------------------------------------------------------------------------
def prepare_params(params, *, td=512, compute_dtype=jnp.bfloat16):
    """Pad / cast weights once and interleave w1,w3 chunk-wise into w13.

    params: dict with (in, out)-stored weights:
        w1 (H, D), b1 (1, D), w3 (H, D), b3 (1, D), w2 (D, H), b2 (1, H)
    """
    w1, b1 = params["w1"], params["b1"]
    w3, b3 = params["w3"], params["b3"]
    w2, b2 = params["w2"], params["b2"]
    H, D = w1.shape
    H_pad = _round_up(H, 128)

    _, budget = _vmem_caps()
    w_isz = jnp.dtype(compute_dtype).itemsize

    # Shrink td first (costs nothing to arithmetic intensity) so the
    # double-buffered weight streams (w13 + w2) fit within ~half the budget.
    td_eff = max(128, min(_round_up(td, 128), _round_up(D, 128)))
    while td_eff > 128 and 6 * H_pad * td_eff * w_isz > budget // 2:
        td_eff -= 128
    D_pad = _round_up(D, td_eff)
    n_chunks = D_pad // td_eff

    w1p = jnp.pad(w1.astype(compute_dtype), ((0, H_pad - H), (0, D_pad - D)))
    w3p = jnp.pad(w3.astype(compute_dtype), ((0, H_pad - H), (0, D_pad - D)))
    # Chunk-interleave: column block d of w13 is [w1_chunk_d | w3_chunk_d].
    w13 = jnp.concatenate(
        [w1p.reshape(H_pad, n_chunks, 1, td_eff),
         w3p.reshape(H_pad, n_chunks, 1, td_eff)], axis=2
    ).reshape(H_pad, 2 * D_pad)

    b1p = jnp.pad(b1.astype(jnp.float32), ((0, 0), (0, D_pad - D)))
    b3p = jnp.pad(b3.astype(jnp.float32), ((0, 0), (0, D_pad - D)))
    b13 = jnp.concatenate(
        [b1p.reshape(1, n_chunks, 1, td_eff),
         b3p.reshape(1, n_chunks, 1, td_eff)], axis=2
    ).reshape(1, 2 * D_pad)

    w2p = jnp.pad(w2.astype(compute_dtype), ((0, D_pad - D), (0, H_pad - H)))
    b2p = jnp.pad(b2.astype(jnp.float32), ((0, 0), (0, H_pad - H)))

    return {
        "w13": w13, "b13": b13, "w2": w2p, "b2": b2p,
        "H": H, "D": D, "H_pad": H_pad, "D_pad": D_pad, "td": td_eff,
        "compute_dtype": compute_dtype,
    }


# ----------------------------------------------------------------------------
# Forward wrapper
# ----------------------------------------------------------------------------
def feed_forward(x, prepped, *, tm=512, out_dtype=None):
    """x: (batch, seq, hidden_size). prepped: result of prepare_params()."""
    B, S, H = x.shape
    assert H == prepped["H"], "hidden size mismatch with prepared params"

    compute_dtype = prepped["compute_dtype"]
    H_pad, D_pad, td = prepped["H_pad"], prepped["D_pad"], prepped["td"]
    out_dtype = compute_dtype if out_dtype is None else out_dtype
    out_isz = jnp.dtype(out_dtype).itemsize
    use_scratch = jnp.dtype(out_dtype) != jnp.dtype(jnp.float32)

    limit, budget = _vmem_caps()
    w_isz = jnp.dtype(compute_dtype).itemsize

    # ---- row-tile selection: as large as the remaining VMEM budget allows,
    #      multiple of 16 (bf16 sublane packing), minimising row padding.
    M = B * S
    weight_bytes = 6 * H_pad * td * w_isz + 2 * (2 * td + H_pad) * 4
    per_row_bytes = H_pad * (2 * w_isz                       # x (double-buffered)
                             + 2 * out_isz                   # out block (double-buffered)
                             + (4 if use_scratch else 0))    # f32 accumulator
    tm_cap = max(16, ((budget - weight_bytes) // per_row_bytes) // 16 * 16)
    tm_req = max(16, min(tm, tm_cap, _round_up(M, 16)))
    tm_req = (tm_req // 16) * 16
    n_tiles = _cdiv(M, tm_req)
    tm_eff = _round_up(_cdiv(M, n_tiles), 16)
    M_pad = n_tiles * tm_eff

    # Only x is padded / cast per call (weights were prepared once).
    x2 = jnp.pad(x.reshape(M, H).astype(compute_dtype),
                 ((0, M_pad - M), (0, H_pad - H)))

    kernel = _ffn_kernel_scratch if use_scratch else _ffn_kernel_direct
    scratch_shapes = ([pltpu.VMEM((tm_eff, H_pad), jnp.float32)]
                      if use_scratch else [])

    out = pl.pallas_call(
        kernel,
        out_shape=jax.ShapeDtypeStruct((M_pad, H_pad), out_dtype),
        grid_spec=pltpu.PrefetchScalarGridSpec(
            num_scalar_prefetch=0,
            grid=(n_tiles, D_pad // td),           # (rows: parallel, D: reduction)
            in_specs=[
                # x rows: block index ignores d -> DMA'd once per row tile.
                pl.BlockSpec((tm_eff, H_pad), lambda i, d: (i, 0)),
                # Fused w1|w3 chunk and its biases stream along the D axis.
                pl.BlockSpec((H_pad, 2 * td), lambda i, d: (0, d)),
                pl.BlockSpec((1, 2 * td), lambda i, d: (0, d)),
                # w2 chunk along D; b2 resident.
                pl.BlockSpec((td, H_pad), lambda i, d: (d, 0)),
                pl.BlockSpec((1, H_pad), lambda i, d: (0, 0)),
            ],
            # Output block revisited across d -> resident accumulation target.
            out_specs=pl.BlockSpec((tm_eff, H_pad), lambda i, d: (i, 0)),
            scratch_shapes=scratch_shapes,
        ),
        compiler_params=pltpu.CompilerParams(
            dimension_semantics=("parallel", "arbitrary"),
            vmem_limit_bytes=limit,
        ),
    )(x2, prepped["w13"], prepped["b13"], prepped["w2"], prepped["b2"])

    return out[:M, :H].reshape(B, S, H)


# ----------------------------------------------------------------------------
# Parameter init matching the PyTorch module, and a pure-JAX reference
# ----------------------------------------------------------------------------
def init_params(key, hidden_size, multiple_of=16):
    # Same hidden_dim derivation as the PyTorch module's __init__.
    hidden_dim = int(2 * hidden_size / 3)
    hidden_dim = multiple_of * ((hidden_dim + multiple_of - 1) // multiple_of)

    k1, k2, k3, k4, k5, k6 = jax.random.split(key, 6)
    s_in = 1.0 / jnp.sqrt(hidden_size)
    s_mid = 1.0 / jnp.sqrt(hidden_dim)
    # Stored as (in, out) — transposed relative to torch.nn.Linear.weight.
    params = {
        "w1": jax.random.uniform(k1, (hidden_size, hidden_dim), jnp.float32, -s_in, s_in),
        "b1": jax.random.uniform(k2, (1, hidden_dim), jnp.float32, -s_in, s_in),
        "w3": jax.random.uniform(k3, (hidden_size, hidden_dim), jnp.float32, -s_in, s_in),
        "b3": jax.random.uniform(k4, (1, hidden_dim), jnp.float32, -s_in, s_in),
        "w2": jax.random.uniform(k5, (hidden_dim, hidden_size), jnp.float32, -s_mid, s_mid),
        "b2": jax.random.uniform(k6, (1, hidden_size), jnp.float32, -s_mid, s_mid),
    }
    return params, hidden_dim


def _reference(x2, params):
    # Mirrors the kernel's bf16 casts so only summation-order / bf16 output
    # rounding remains as a difference.
    f32 = jnp.float32
    xb = x2.astype(jnp.bfloat16).astype(f32)
    w1 = params["w1"].astype(jnp.bfloat16).astype(f32)
    w3 = params["w3"].astype(jnp.bfloat16).astype(f32)
    w2 = params["w2"].astype(jnp.bfloat16).astype(f32)
    b1 = params["b1"].astype(f32)[0]
    b3 = params["b3"].astype(f32)[0]
    b2 = params["b2"].astype(f32)[0]
    h1 = xb @ w1 + b1
    h1 = h1 * jax.nn.sigmoid(h1)
    h3 = xb @ w3 + b3
    g = (h1 * h3).astype(jnp.bfloat16).astype(f32)
    return g @ w2 + b2


if __name__ == "__main__":
    key = jax.random.PRNGKey(0)
    kx, kp = jax.random.split(key)

    # Small demo shapes; hidden_size=256 -> hidden_dim=176 via the module formula.
    batch, seq, hidden_size = 2, 16, 256
    params, hidden_dim = init_params(kp, hidden_size)

    # One-time parameter prep (small td here so the demo exercises the D loop;
    # production default is td=512, auto-shrunk for VMEM).
    prepped = prepare_params(params, td=128)

    x = jax.random.normal(kx, (batch, seq, hidden_size), jnp.float32)

    # Small tm so the demo exercises both grid axes (2 row tiles x 2 D-chunks);
    # production default is tm=512 (VMEM-budgeted).
    out = feed_forward(x, prepped, tm=16)
    out = jax.block_until_ready(out)

    ref = _reference(x.reshape(-1, hidden_size), params).reshape(batch, seq, hidden_size)
    assert out.shape == (batch, seq, hidden_size)
    assert jnp.allclose(out.astype(jnp.float32), ref, atol=2e-2, rtol=2e-2), \
        "mismatch vs reference"

    print("KERNEL_OK")
</pallas_src>

<mosaic_0001>
module attributes {stable_mosaic.version = 11 : i64} {
  func.func @_ffn_kernel_scratch(%arg0: i32, %arg1: i32, %arg2: memref<16x256xbf16, #tpu.memory_space<vmem>>, %arg3: memref<256x256xbf16, #tpu.memory_space<vmem>>, %arg4: memref<1x256xf32, #tpu.memory_space<vmem>>, %arg5: memref<128x256xbf16, #tpu.memory_space<vmem>>, %arg6: memref<1x256xf32, #tpu.memory_space<vmem>>, %arg7: memref<16x256xbf16, #tpu.memory_space<vmem>>, %arg8: memref<16x256xf32, #tpu.memory_space<vmem>>) attributes {dimension_semantics = [#tpu.dimension_semantics<parallel>, #tpu.dimension_semantics<arbitrary>], iteration_bounds = array<i64: 2, 2>, scalar_prefetch = 0 : i64, scratch_operands = 1 : i64, tpu.core_type = #tpu.core_type<tc>, window_params = [{transform_indices = @transform_0, window_bounds = array<i64: 16, 256>}, {transform_indices = @transform_1, window_bounds = array<i64: 256, 256>}, {transform_indices = @transform_2, window_bounds = array<i64: 1, 256>}, {transform_indices = @transform_3, window_bounds = array<i64: 128, 256>}, {pipeline_mode = #tpu.pipeline_mode<synchronous>, transform_indices = @transform_4, window_bounds = array<i64: 1, 256>}, {transform_indices = @transform_5, window_bounds = array<i64: 16, 256>}]} {
    %c0_i32 = arith.constant 0 : i32
    %0 = arith.cmpi eq, %arg1, %c0_i32 : i32
    %1 = arith.extui %0 : i1 to i32
    %c0_i32_0 = arith.constant 0 : i32
    %2 = arith.cmpi ne, %1, %c0_i32_0 : i32
    scf.if %2 {
      %c0_15 = arith.constant 0 : index
      %c0_16 = arith.constant 0 : index
      %27 = vector.load %arg6[%c0_15, %c0_16] : memref<1x256xf32, #tpu.memory_space<vmem>>, vector<1x256xf32>
      %28 = vector.shape_cast %27 : vector<1x256xf32> to vector<1x256xf32>
      %29 = vector.broadcast %28 : vector<1x256xf32> to vector<16x256xf32>
      %c0_17 = arith.constant 0 : index
      %c0_18 = arith.constant 0 : index
      %30 = vector.load %arg8[%c0_17, %c0_18] : memref<16x256xf32, #tpu.memory_space<vmem>>, vector<16x256xf32>
      tpu.vector_store %arg8[%c0_17, %c0_18], %29 {strides = array<i32>} : memref<16x256xf32, #tpu.memory_space<vmem>>, vector<16x256xf32>,
    } else {
    }
    %c0 = arith.constant 0 : index
    %c0_1 = arith.constant 0 : index
    %3 = vector.load %arg2[%c0, %c0_1] : memref<16x256xbf16, #tpu.memory_space<vmem>>, vector<16x256xbf16>
    %c0_2 = arith.constant 0 : index
    %c0_3 = arith.constant 0 : index
    %4 = vector.load %arg3[%c0_2, %c0_3] : memref<256x256xbf16, #tpu.memory_space<vmem>>, vector<256x256xbf16>
    %cst = arith.constant dense<0.000000e+00> : vector<16x256xf32>
    %5 = tpu.matmul %3, %4, %cst {dimension_numbers = #tpu.dot_dimension_numbers<[1], [0], [0], [1], [0, 0, 1, 1], [], []>} : vector<16x256xbf16>, vector<256x256xbf16>, vector<16x256xf32> -> vector<16x256xf32>
    %c0_4 = arith.constant 0 : index
    %c0_5 = arith.constant 0 : index
    %6 = vector.load %arg4[%c0_4, %c0_5] : memref<1x256xf32, #tpu.memory_space<vmem>>, vector<1x256xf32>
    %7 = vector.broadcast %6 : vector<1x256xf32> to vector<16x256xf32>
    %8 = arith.addf %5, %7 : vector<16x256xf32>
    %9 = vector.extract_strided_slice %8 {offsets = [0, 0], sizes = [16, 128], strides = [1, 1]} : vector<16x256xf32> to vector<16x128xf32>
    %10 = vector.extract_strided_slice %8 {offsets = [0, 128], sizes = [16, 128], strides = [1, 1]} : vector<16x256xf32> to vector<16x128xf32>
    %11 = arith.negf %9 : vector<16x128xf32>
    %12 = math.exp %11 : vector<16x128xf32>
    %cst_6 = arith.constant 1.000000e+00 : f32
    %13 = vector.broadcast %cst_6 : f32 to vector<16x128xf32>
    %14 = arith.addf %13, %12 : vector<16x128xf32>
    %15 = arith.divf %13, %14 : vector<16x128xf32>
    %16 = arith.mulf %9, %15 : vector<16x128xf32>
    %17 = arith.mulf %16, %10 : vector<16x128xf32>
    %18 = arith.truncf %17 : vector<16x128xf32> to vector<16x128xbf16>
    %c0_7 = arith.constant 0 : index
    %c0_8 = arith.constant 0 : index
    %19 = vector.load %arg8[%c0_7, %c0_8] : memref<16x256xf32, #tpu.memory_space<vmem>>, vector<16x256xf32>
    %c0_9 = arith.constant 0 : index
    %c0_10 = arith.constant 0 : index
    %20 = vector.load %arg5[%c0_9, %c0_10] : memref<128x256xbf16, #tpu.memory_space<vmem>>, vector<128x256xbf16>
    %cst_11 = arith.constant dense<0.000000e+00> : vector<16x256xf32>
    %21 = tpu.matmul %18, %20, %cst_11 {dimension_numbers = #tpu.dot_dimension_numbers<[1], [0], [0], [1], [0, 0, 1, 1], [], []>} : vector<16x128xbf16>, vector<128x256xbf16>, vector<16x256xf32> -> vector<16x256xf32>
    %22 = arith.addf %19, %21 : vector<16x256xf32>
    %c0_12 = arith.constant 0 : index
    %c0_13 = arith.constant 0 : index
    %23 = vector.load %arg8[%c0_12, %c0_13] : memref<16x256xf32, #tpu.memory_space<vmem>>, vector<16x256xf32>
    tpu.vector_store %arg8[%c0_12, %c0_13], %22 {strides = array<i32>} : memref<16x256xf32, #tpu.memory_space<vmem>>, vector<16x256xf32>,
    %c1_i32 = arith.constant 1 : i32
    %24 = arith.cmpi eq, %arg1, %c1_i32 : i32
    %25 = arith.extui %24 : i1 to i32
    %c0_i32_14 = arith.constant 0 : i32
    %26 = arith.cmpi ne, %25, %c0_i32_14 : i32
    scf.if %26 {
      %c0_15 = arith.constant 0 : index
      %c0_16 = arith.constant 0 : index
      %27 = vector.load %arg8[%c0_15, %c0_16] : memref<16x256xf32, #tpu.memory_space<vmem>>, vector<16x256xf32>
      %28 = arith.truncf %27 : vector<16x256xf32> to vector<16x256xbf16>
      %c0_17 = arith.constant 0 : index
      %c0_18 = arith.constant 0 : index
      %29 = vector.load %arg7[%c0_17, %c0_18] : memref<16x256xbf16, #tpu.memory_space<vmem>>, vector<16x256xbf16>
      tpu.vector_store %arg7[%c0_17, %c0_18], %28 {strides = array<i32>} : memref<16x256xbf16, #tpu.memory_space<vmem>>, vector<16x256xbf16>,
    } else {
    }
    return
  }
  func.func @transform_0(%arg0: i32, %arg1: i32) -> (i32, i32) {
    %c0_i32 = arith.constant 0 : i32
    %c0_i32_0 = arith.constant 0 : i32
    return %arg0, %c0_i32 : i32, i32
  }
  func.func @transform_1(%arg0: i32, %arg1: i32) -> (i32, i32) {
    %c0_i32 = arith.constant 0 : i32
    %c0_i32_0 = arith.constant 0 : i32
    return %c0_i32, %arg1 : i32, i32
  }
  func.func @transform_2(%arg0: i32, %arg1: i32) -> (i32, i32) {
    %c0_i32 = arith.constant 0 : i32
    %c0_i32_0 = arith.constant 0 : i32
    return %c0_i32, %arg1 : i32, i32
  }
  func.func @transform_3(%arg0: i32, %arg1: i32) -> (i32, i32) {
    %c0_i32 = arith.constant 0 : i32
    %c0_i32_0 = arith.constant 0 : i32
    return %arg1, %c0_i32 : i32, i32
  }
  func.func @transform_4(%arg0: i32, %arg1: i32) -> (i32, i32) {
    %c0_i32 = arith.constant 0 : i32
    %c0_i32_0 = arith.constant 0 : i32
    %c0_i32_1 = arith.constant 0 : i32
    return %c0_i32, %c0_i32_0 : i32, i32
  }
  func.func @transform_5(%arg0: i32, %arg1: i32) -> (i32, i32) {
    %c0_i32 = arith.constant 0 : i32
    %c0_i32_0 = arith.constant 0 : i32
    return %arg0, %c0_i32 : i32, i32
  }
}

</mosaic_0001>

<llo_original>
// kernel: tpu_custom_call.1
$region0: #{tpu_custom_call.1}
  #allocation0 [shape = 'u32[]', space=smem, size = 0x4, offset = 0x4, fixed_abs, tag = 'smem constant byte address 0x4 - core index']
  #allocation1 [shape = 'u32[144,128]{1,0:T(1,128)}', space=vmem, size = 0x12000, scoped, tag = 'internal scratch']
  #allocation2 [shape = 'f32[16,256]{1,0:T(8,128)}', space=vmem, size = 0x4000, scoped, tag = 'scratch operand']
  %s0 = inlined_call_operand.hbm [shape: bf16[32,256], index: 0, kind: input, shape index: {}]
  %s1 = inlined_call_operand.hbm [shape: bf16[256,512], index: 1, kind: input, shape index: {}]
  %s2 = inlined_call_operand.vmem [shape: f32[1,512], index: 2, kind: input, shape index: {}]
  %s3 = inlined_call_operand.hbm [shape: bf16[256,256], index: 3, kind: input, shape index: {}]
  %s4 = inlined_call_operand.vmem [shape: f32[1,256], index: 4, kind: input, shape index: {}]
  %s5 = inlined_call_operand.hbm [shape: bf16[32,256], index: 5, kind: output, shape index: {}]
  %s6 = sld [smem:[#allocation0]]
  $region73: #{tpu_custom_call.1} parent=0
    _
  %s8 = ssub.s32 1, %s6
  %s9 = scalar_select 0, %s8, %s6
  $region1: #{tpu_custom_call.1} parent=0
    #allocation3 [shape = 'u8[16384]{0}', space=vmem, size = 0x4000, scoped, tag = 'input window, operand 0']
    #allocation4 [shape = 's32[2]{0}', space=sflag, size = 0x8, scoped, tag = 'scoped memory for tpu_custom_call.1']
    #allocation5 [shape = 's32[2]{0}', space=sflag, size = 0x8, scoped, tag = 'scoped memory for tpu_custom_call.1']
    #allocation6 [shape = 'u8[262144]{0}', space=vmem, size = 0x40000, scoped, tag = 'input window, operand 1']
    #allocation7 [shape = 's32[2]{0}', space=sflag, size = 0x8, scoped, tag = 'scoped memory for tpu_custom_call.1']
    #allocation8 [shape = 'u8[131072]{0}', space=vmem, size = 0x20000, scoped, tag = 'input window, operand 3']
    #allocation9 [shape = 'u8[16384]{0}', space=vmem, size = 0x4000, scoped, tag = 'output window, operand 0']
    %10 = vsyncpa [#allocation4], 0
    %s11 = scalar_lea.sflag [#allocation4], 1
    %12 = vsyncpa %s11, 0
    %13 = vsyncpa [#allocation7], 0
    %s14 = scalar_lea.sflag [#allocation7], 1
    %15 = vsyncpa %s14, 0
    %16 = vsyncpa [#allocation5], 0
    %s17 = scalar_lea.sflag [#allocation5], 1
    %18 = vsyncpa %s17, 0
    loop: start=0, step=1, limit=6
    $region2: #{tpu_custom_call.1} parent=1 // loop_pre_header
      _
    $region3: #{tpu_custom_call.1} parent=1 // loop_header
      %s20 = sphi 0, %s24
      %p21 = scmp.ge.s32.totalorder %s20, 6
      %s27 = sphi 0, %s39
      %s28 = sphi 0, %s35
      %s29 = sphi 0, %s27
      %s30 = sphi 0, %s28
      %s31 = sphi 0, %s29
      %s32 = sphi 0, %s30
      %s42 = sphi 0, %s44
      %s45 = sphi 0, %s42
      %s46 = sphi 0, %s45
      %s62 = sphi 0, %s46
      %s68 = sphi 0, %s70
      %s71 = sphi 0, %s68
      %s72 = sphi 0, %s71
      %s88 = sphi 0, %s72
      %s94 = sphi 0, %s96
      %s97 = sphi 0, %s94
      %s98 = sphi 0, %s97
      %s114 = sphi 0, %s98
      %s120 = sphi 0, %s122
      %s123 = sphi 0, %s120
      %s124 = sphi 0, %s123
      %s140 = sphi 0, %s124
      %s144 = sphi 0, %s144
      %s146 = sphi 0, %s144
      %s147 = sphi 0, %s146
      %s161 = sphi 0, %s147
      %s167 = sphi 0, %s169
      %s170 = sphi 0, %s167
      %s171 = sphi 0, %s170
      %s187 = sphi 0, %s171
    $region4: #{tpu_custom_call.1} parent=1 // loop_header_branch
      %23 = sbr.rel (%p21) target = $region8
    $region5: #{tpu_custom_call.1} parent=1 // loop_body
      %s25 = ssub.s32 %s20, 1
      %s26 = ssub.s32 %s20, 2
      %s33 = sadd.s32 1, %s28
      %p34 = scmp.ge.s32.totalorder %s33, 2
      %s35 = scalar_select %p34, 0, %s33
      %s36 = sadd.s32 1, %s27
      %s37 = scalar_select %p34, %s36, %s27
      %p38 = scmp.ge.s32.totalorder %s37, 2
      %s39 = scalar_select %p38, 0, %s37
      %s40 = ssub.s32 %s27, %s39
      %p41 = scmp.eq.s32.totalorder %s40, 0
      %s43 = sadd.s32 %s42, 1
      %s44 = scalar_select %p41, %s42, %s43
      %p47 = pneg %p41
      %p48 = scmp.eq.s32.totalorder %s20, 3
      %p49 = por %p47, %p48
      %p50 = scmp.ne.s32.totalorder %s42, %s45
      %p51 = scmp.eq.s32.totalorder %s20, 0
      %p52 = por %p50, %p51
      %p53 = scmp.ne.s32.totalorder %s42, %s45
      %p54 = scmp.eq.s32.totalorder %s25, 3
      %p55 = por %p53, %p54
      %p56 = scmp.ne.s32.totalorder %s45, %s46
      %p57 = scmp.eq.s32.totalorder %s25, 0
      %p58 = por %p56, %p57
      %p59 = scmp.ne.s32.totalorder %s45, %s46
      %p60 = scmp.eq.s32.totalorder %s26, 3
      %p61 = por %p59, %p60
      %p63 = scmp.ne.s32.totalorder %s46, %s62
      %p64 = scmp.eq.s32.totalorder %s26, 0
      %p65 = por %p63, %p64
      %s66 = ssub.s32 %s28, %s35
      %p67 = scmp.eq.s32.totalorder %s66, 0
      %s69 = sadd.s32 %s68, 1
      %s70 = scalar_select %p67, %s68, %s69
      %p73 = pneg %p67
      %p74 = scmp.eq.s32.totalorder %s20, 3
      %p75 = por %p73, %p74
      %p76 = scmp.ne.s32.totalorder %s68, %s71
      %p77 = scmp.eq.s32.totalorder %s20, 0
      %p78 = por %p76, %p77
      %p79 = scmp.ne.s32.totalorder %s68, %s71
      %p80 = scmp.eq.s32.totalorder %s25, 3
      %p81 = por %p79, %p80
      %p82 = scmp.ne.s32.totalorder %s71, %s72
      %p83 = scmp.eq.s32.totalorder %s25, 0
      %p84 = por %p82, %p83
      %p85 = scmp.ne.s32.totalorder %s71, %s72
      %p86 = scmp.eq.s32.totalorder %s26, 3
      %p87 = por %p85, %p86
      %p89 = scmp.ne.s32.totalorder %s72, %s88
      %p90 = scmp.eq.s32.totalorder %s26, 0
      %p91 = por %p89, %p90
      %s92 = ssub.s32 %s28, %s35
      %p93 = scmp.eq.s32.totalorder %s92, 0
      %s95 = sadd.s32 %s94, 1
      %s96 = scalar_select %p93, %s94, %s95
      %p99 = pneg %p93
      %p100 = scmp.eq.s32.totalorder %s20, 3
      %p101 = por %p99, %p100
      %p102 = scmp.ne.s32.totalorder %s94, %s97
      %p103 = scmp.eq.s32.totalorder %s20, 0
      %p104 = por %p102, %p103
      %p105 = scmp.ne.s32.totalorder %s94, %s97
      %p106 = scmp.eq.s32.totalorder %s25, 3
      %p107 = por %p105, %p106
      %p108 = scmp.ne.s32.totalorder %s97, %s98
      %p109 = scmp.eq.s32.totalorder %s25, 0
      %p110 = por %p108, %p109
      %p111 = scmp.ne.s32.totalorder %s97, %s98
      %p112 = scmp.eq.s32.totalorder %s26, 3
      %p113 = por %p111, %p112
      %p115 = scmp.ne.s32.totalorder %s98, %s114
      %p116 = scmp.eq.s32.totalorder %s26, 0
      %p117 = por %p115, %p116
      %s118 = ssub.s32 %s28, %s35
      %p119 = scmp.eq.s32.totalorder %s118, 0
      %s121 = sadd.s32 %s120, 1
      %s122 = scalar_select %p119, %s120, %s121
      %p125 = pneg %p119
      %p126 = scmp.eq.s32.totalorder %s20, 3
      %p127 = por %p125, %p126
      %p128 = scmp.ne.s32.totalorder %s120, %s123
      %p129 = scmp.eq.s32.totalorder %s20, 0
      %p130 = por %p128, %p129
      %p131 = scmp.ne.s32.totalorder %s120, %s123
      %p132 = scmp.eq.s32.totalorder %s25, 3
      %p133 = por %p131, %p132
      %p134 = scmp.ne.s32.totalorder %s123, %s124
      %p135 = scmp.eq.s32.totalorder %s25, 0
      %p136 = por %p134, %p135
      %p137 = scmp.ne.s32.totalorder %s123, %s124
      %p138 = scmp.eq.s32.totalorder %s26, 3
      %p139 = por %p137, %p138
      %p141 = scmp.ne.s32.totalorder %s124, %s140
      %p142 = scmp.eq.s32.totalorder %s26, 0
      %p143 = por %p141, %p142
      %s145 = sadd.s32 %s144, 1
      %p148 = scmp.eq.s32.totalorder %s20, 3
      %p149 = scmp.ne.s32.totalorder %s144, %s146
      %p150 = scmp.eq.s32.totalorder %s20, 0
      %p151 = por %p149, %p150
      %p152 = scmp.ne.s32.totalorder %s144, %s146
      %p153 = scmp.eq.s32.totalorder %s25, 3
      %p154 = por %p152, %p153
      %p155 = scmp.ne.s32.totalorder %s146, %s147
      %p156 = scmp.eq.s32.totalorder %s25, 0
      %p157 = por %p155, %p156
      %p158 = scmp.ne.s32.totalorder %s146, %s147
      %p159 = scmp.eq.s32.totalorder %s26, 3
      %p160 = por %p158, %p159
      %p162 = scmp.ne.s32.totalorder %s147, %s161
      %p163 = scmp.eq.s32.totalorder %s26, 0
      %p164 = por %p162, %p163
      %s165 = ssub.s32 %s27, %s39
      %p166 = scmp.eq.s32.totalorder %s165, 0
      %s168 = sadd.s32 %s167, 1
      %s169 = scalar_select %p166, %s167, %s168
      %p172 = pneg %p166
      %p173 = scmp.eq.s32.totalorder %s20, 3
      %p174 = por %p172, %p173
      %p175 = scmp.ne.s32.totalorder %s167, %s170
      %p176 = scmp.eq.s32.totalorder %s20, 0
      %p177 = por %p175, %p176
      %p178 = scmp.ne.s32.totalorder %s167, %s170
      %p179 = scmp.eq.s32.totalorder %s25, 3
      %p180 = por %p178, %p179
      %p181 = scmp.ne.s32.totalorder %s170, %s171
      %p182 = scmp.eq.s32.totalorder %s25, 0
      %p183 = por %p181, %p182
      %p184 = scmp.ne.s32.totalorder %s170, %s171
      %p185 = scmp.eq.s32.totalorder %s26, 3
      %p186 = por %p184, %p185
      %p188 = scmp.ne.s32.totalorder %s171, %s187
      %p189 = scmp.eq.s32.totalorder %s26, 0
      %p190 = por %p188, %p189
      %p191 = scmp.le.s32.totalorder 1, %s20
      %p192 = scmp.lt.s32.totalorder %s20, 5
      %p193 = pnand %p191, %p192
      %p194 = pneg %p193
      // Predicated region
      $region9: #{tpu_custom_call.1} parent=5 // pred_check
        _
      $region10: #{tpu_custom_call.1} parent=5 // pred_check_branch
        %196 = sbr.rel (%p193) target = $region12
      $region11: #{tpu_custom_call.1} parent=5 // pred_region
        %s197 = ssub.s32 %s20, 1
        // Predicated region
        $region13: #{tpu_custom_call.1} parent=11 // pred_check
          %p198 = pneg %p157
        $region14: #{tpu_custom_call.1} parent=11 // pred_check_branch
          %200 = sbr.rel (%p198) target = $region16
        $region15: #{tpu_custom_call.1} parent=11 // pred_region
          _
        $region16: #{tpu_custom_call.1} parent=11 // pred_fallthru
          _
      $region12: #{tpu_custom_call.1} parent=5 // pred_fallthru
        _
      %p201 = scmp.lt.s32.totalorder %s20, 4
      // Predicated region
      $region17: #{tpu_custom_call.1} parent=5 // pred_check
        %p202 = pneg %p201
      $region18: #{tpu_custom_call.1} parent=5 // pred_check_branch
        %204 = sbr.rel (%p202) target = $region20
      $region19: #{tpu_custom_call.1} parent=5 // pred_region
        // Predicated region
        $region21: #{tpu_custom_call.1} parent=19 // pred_check
          %p205 = pneg %p52
        $region22: #{tpu_custom_call.1} parent=19 // pred_check_branch
          %207 = sbr.rel (%p205) target = $region24
        $region23: #{tpu_custom_call.1} parent=19 // pred_region
          %s208 = sand.u32 %s42, 1
          %s209 = scalar_lea.sflag [#allocation4], %s208
          %s210 = sand.u32 %s42, 1
          %s211 = smul.addr %s210, 16
          %s212 = scalar_lea.vmem [#allocation3], %s211
          %s213 = smul.u32 2, %s27
          %s215 = ssub.s32 256, 256
          %216 = vsyncadd %s209, %s215
          %s217 = smul.addr %s213, 2
          %s218 = smul.addr %s217, 64
          %s219 = scalar_lea.hbm %s0, %s218
          %s220 = sshll.u32 %s212, 4
          %s221 = int_to_ptr.vmem [resolvable:$true] %s220
          %226 = dma.hbm_to_vmem [thread:$0]  %s219, 256, %s221, %s209, 128, 128, 8
        $region24: #{tpu_custom_call.1} parent=19 // pred_fallthru
          _
        // Predicated region
        $region25: #{tpu_custom_call.1} parent=19 // pred_check
          %p227 = pneg %p78
        $region26: #{tpu_custom_call.1} parent=19 // pred_check_branch
          %229 = sbr.rel (%p227) target = $region28
        $region27: #{tpu_custom_call.1} parent=19 // pred_region
          %s230 = sand.u32 %s20, 1
          %s231 = scalar_lea.sflag [#allocation7], %s230
          %s232 = sand.u32 %s68, 1
          %s233 = smul.addr %s232, 256
          %s234 = scalar_lea.vmem [#allocation6], %s233
          %s235 = smul.u32 2, %s28
          %s237 = ssub.s32 4096, 4096
          %238 = vsyncadd %s231, %s237
          %s239 = smul.addr %s235, 64
          %s240 = scalar_lea.hbm %s1, %s239
          %s241 = sshll.u32 %s234, 4
          %s242 = int_to_ptr.vmem [resolvable:$true] %s241
          %247 = dma.hbm_to_vmem [thread:$0]  %s240, 4096, %s242, %s231, 256, 128, 8
        $region28: #{tpu_custom_call.1} parent=19 // pred_fallthru
          _
        // Predicated region
        $region29: #{tpu_custom_call.1} parent=19 // pred_check
          %p248 = pneg %p104
        $region30: #{tpu_custom_call.1} parent=19 // pred_check_branch
          %250 = sbr.rel (%p248) target = $region32
        $region31: #{tpu_custom_call.1} parent=19 // pred_region
          %s251 = smul.u32 2, %s28
          %p252 = scmp.lt.s32.totalorder %s251, 3
          %s253 = scalar_select %p252, %s251, 3
          %s254 = scalar_lea.vmem %s2, %s253
          %s255 = smul.u32 2, %s28
        $region32: #{tpu_custom_call.1} parent=19 // pred_fallthru
          _
        // Predicated region
        $region33: #{tpu_custom_call.1} parent=19 // pred_check
          %p256 = pneg %p130
        $region34: #{tpu_custom_call.1} parent=19 // pred_check_branch
          %258 = sbr.rel (%p256) target = $region36
        $region35: #{tpu_custom_call.1} parent=19 // pred_region
          %s259 = sand.u32 %s20, 1
          %s260 = scalar_lea.sflag [#allocation7], %s259
          %s261 = sand.u32 %s120, 1
          %s262 = smul.addr %s261, 128
          %s263 = scalar_lea.vmem [#allocation8], %s262
          %s264 = smul.u32 16, %s28
          %s266 = ssub.s32 2048, 2048
          %267 = vsyncadd %s260, %s266
          %s268 = smul.addr %s264, 2
          %s269 = smul.addr %s268, 64
          %s270 = scalar_lea.hbm %s3, %s269
          %s271 = sshll.u32 %s263, 4
          %s272 = int_to_ptr.vmem [resolvable:$true] %s271
          %277 = dma.hbm_to_vmem [thread:$0]  %s270, 2048, %s272, %s260, 128, 128, 8
        $region36: #{tpu_custom_call.1} parent=19 // pred_fallthru
          _
      $region20: #{tpu_custom_call.1} parent=5 // pred_fallthru
        _
      %p278 = scmp.le.s32.totalorder 1, %s20
      %p279 = scmp.lt.s32.totalorder %s20, 5
      %p280 = pnand %p278, %p279
      %p281 = pneg %p280
      // Predicated region
      $region37: #{tpu_custom_call.1} parent=5 // pred_check
        _
      $region38: #{tpu_custom_call.1} parent=5 // pred_check_branch
        %283 = sbr.rel (%p280) target = $region40
      $region39: #{tpu_custom_call.1} parent=5 // pred_region
        %s284 = ssub.s32 %s20, 1
        %s285 = sand.u32 %s45, 1
        %s286 = scalar_lea.sflag [#allocation4], %s285
        %s287 = sand.u32 %s45, 1
        %s288 = smul.addr %s287, 16
        %s289 = scalar_lea.vmem [#allocation3], %s288
        // Predicated region
        $region41: #{tpu_custom_call.1} parent=39 // pred_check
          %p290 = pneg %p58
        $region42: #{tpu_custom_call.1} parent=39 // pred_check_branch
          %292 = sbr.rel (%p290) target = $region44
        $region43: #{tpu_custom_call.1} parent=39 // pred_region
          %293 = dma.done %s286, 256
        $region44: #{tpu_custom_call.1} parent=39 // pred_fallthru
          _
        %s294 = sand.u32 %s25, 1
        %s295 = scalar_lea.sflag [#allocation7], %s294
        %s296 = sand.u32 %s71, 1
        %s297 = smul.addr %s296, 256
        %s298 = scalar_lea.vmem [#allocation6], %s297
        // Predicated region
        $region45: #{tpu_custom_call.1} parent=39 // pred_check
          %p299 = pneg %p84
        $region46: #{tpu_custom_call.1} parent=39 // pred_check_branch
          %301 = sbr.rel (%p299) target = $region48
        $region47: #{tpu_custom_call.1} parent=39 // pred_region
          %302 = dma.done %s295, 4096
        $region48: #{tpu_custom_call.1} parent=39 // pred_fallthru
          _
        %s303 = sand.u32 %s25, 1
        %s304 = scalar_lea.sflag [#allocation7], %s303
        %s305 = sand.u32 %s123, 1
        %s306 = smul.addr %s305, 128
        %s307 = scalar_lea.vmem [#allocation8], %s306
        // Predicated region
        $region49: #{tpu_custom_call.1} parent=39 // pred_check
          %p308 = pneg %p136
        $region50: #{tpu_custom_call.1} parent=39 // pred_check_branch
          %310 = sbr.rel (%p308) target = $region52
        $region51: #{tpu_custom_call.1} parent=39 // pred_region
          %311 = dma.done %s304, 2048
        $region52: #{tpu_custom_call.1} parent=39 // pred_fallthru
          _
        %s312 = sand.u32 %s45, 1
        %s313 = scalar_lea.sflag [#allocation4], %s312
        %s314 = sand.u32 %s45, 1
        %s315 = smul.addr %s314, 16
        %s316 = scalar_lea.vmem [#allocation3], %s315
        %p317 = pneg %p58
        %p318 = pneg %p55
        %s319 = sand.u32 %s25, 1
        %s320 = scalar_lea.sflag [#allocation7], %s319
        %s321 = sand.u32 %s71, 1
        %s322 = smul.addr %s321, 256
        %s323 = scalar_lea.vmem [#allocation6], %s322
        %p324 = pneg %p84
        %p325 = pneg %p81
        %s326 = smul.u32 2, %s30
        %p327 = scmp.lt.s32.totalorder %s326, 3
        %s328 = scalar_select %p327, %s326, 3
        %s329 = scalar_lea.vmem %s2, %s328
        %p330 = pneg %p110
        %p331 = pneg %p107
        %s332 = sand.u32 %s25, 1
        %s333 = scalar_lea.sflag [#allocation7], %s332
        %s334 = sand.u32 %s123, 1
        %s335 = smul.addr %s334, 128
        %s336 = scalar_lea.vmem [#allocation8], %s335
        %p337 = pneg %p136
        %p338 = pneg %p133
        %p339 = pneg %p157
        %p340 = pneg %p154
        %p341 = pneg %p183
        %p342 = pneg %p180
        %s343 = sand.u32 %s170, 1
        %s344 = scalar_lea.sflag [#allocation5], %s343
        %s345 = sand.u32 %s170, 1
        %s346 = smul.addr %s345, 16
        %s347 = scalar_lea.vmem [#allocation9], %s346
        %s348 = smul.u32 2, %s29
        %s349 = smul.u32 2, %s30
        %s350 = smul.u32 2, %s30
        %p351 = scmp.lt.s32.totalorder %s350, 3
        %s352 = scalar_select %p351, %s350, 3
        %s353 = scalar_lea.vmem %s2, %s352
        %s354 = smul.u32 2, %s30
        %s355 = smul.u32 16, %s30
        %s356 = smul.u32 2, %s29
        %p358 = scmp.eq.s32.totalorder %s30, 0
        // Predicated region
        $region53: #{tpu_custom_call.1} parent=39 // pred_check
          %p359 = pneg %p358
        $region54: #{tpu_custom_call.1} parent=39 // pred_check_branch
          %361 = sbr.rel (%p359) target = $region56
        $region55: #{tpu_custom_call.1} parent=39 // pred_region
          %v362 = vld [vmem:[%s4] sm:$0x3]
          %v364 = vlaneseq
          %v365 = vshrl.u32 %v364, 7
          %v366 = vsub.s32 0, %v365
          %v367 = vrot.slane %v362, %v366
          %v368 = vlaneseq
          %v369 = vshrl.u32 %v368, 7
          %v370 = vsub.s32 1, %v369
          %v371 = vrot.slane %v362, %v370
          %374 = vst [vmem:[#allocation2] sm:$0xff] %v367
          %375 = vst [vmem:[#allocation2 + $0x8] sm:$0xff] %v371
          %376 = vst [vmem:[#allocation2 + $0x10] sm:$0xff] %v367
          %377 = vst [vmem:[#allocation2 + $0x18] sm:$0xff] %v371
        $region56: #{tpu_custom_call.1} parent=39 // pred_fallthru
          _
        %v378 = vld [vmem:[%s289] sm:$0xff]
        %v379 = vld [vmem:[%s289 + $0x8] sm:$0xff]
        %v380 = vld [vmem:[%s298] sm:$0xff]
        %v381 = vld [vmem:[%s298 + $0x8] sm:$0xff]
        %v382 = vld [vmem:[%s298 + $0x10] sm:$0xff]
        %v383 = vld [vmem:[%s298 + $0x18] sm:$0xff]
        %v384 = vld [vmem:[%s298 + $0x20] sm:$0xff]
        %v385 = vld [vmem:[%s298 + $0x28] sm:$0xff]
        %v386 = vld [vmem:[%s298 + $0x30] sm:$0xff]
        %v387 = vld [vmem:[%s298 + $0x38] sm:$0xff]
        %v388 = vld [vmem:[%s298 + $0x40] sm:$0xff]
        %v389 = vld [vmem:[%s298 + $0x48] sm:$0xff]
        %v390 = vld [vmem:[%s298 + $0x50] sm:$0xff]
        %v391 = vld [vmem:[%s298 + $0x58] sm:$0xff]
        %v392 = vld [vmem:[%s298 + $0x60] sm:$0xff]
        %v393 = vld [vmem:[%s298 + $0x68] sm:$0xff]
        %v394 = vld [vmem:[%s298 + $0x70] sm:$0xff]
        %v395 = vld [vmem:[%s298 + $0x78] sm:$0xff]
        %v396 = vld [vmem:[%s298 + $0x80] sm:$0xff]
        %v397 = vld [vmem:[%s298 + $0x88] sm:$0xff]
        %v398 = vld [vmem:[%s298 + $0x90] sm:$0xff]
        %v399 = vld [vmem:[%s298 + $0x98] sm:$0xff]
        %v400 = vld [vmem:[%s298 + $0xa0] sm:$0xff]
        %v401 = vld [vmem:[%s298 + $0xa8] sm:$0xff]
        %v402 = vld [vmem:[%s298 + $0xb0] sm:$0xff]
        %v403 = vld [vmem:[%s298 + $0xb8] sm:$0xff]
        %v404 = vld [vmem:[%s298 + $0xc0] sm:$0xff]
        %v405 = vld [vmem:[%s298 + $0xc8] sm:$0xff]
        %v406 = vld [vmem:[%s298 + $0xd0] sm:$0xff]
        %v407 = vld [vmem:[%s298 + $0xd8] sm:$0xff]
        %v408 = vld [vmem:[%s298 + $0xe0] sm:$0xff]
        %v409 = vld [vmem:[%s298 + $0xe8] sm:$0xff]
        %v410 = vld [vmem:[%s298 + $0xf0] sm:$0xff]
        %v411 = vld [vmem:[%s298 + $0xf8] sm:$0xff]
        %v412 = vld [vmem:[%s353] sm:$0x3]
        %v414 = vlaneseq
        %v415 = vshrl.u32 %v414, 7
        %v416 = vsub.s32 0, %v415
        %v417 = vrot.slane %v412, %v416
        %v418 = vlaneseq
        %v419 = vshrl.u32 %v418, 7
        %v420 = vsub.s32 1, %v419
        %v421 = vrot.slane %v412, %v420
        %v426 = vunpack.c.l.b16 %v378
        %v427 = vunpack.c.h.b16 %v378
        %v428 = vunpack.c.l.b16 %v379
        %v429 = vunpack.c.h.b16 %v379
        %v430 = vpack.c.b16 %v428, %v426
        %v431 = vpack.c.b16 %v429, %v427
        %v466 = vunpack.c.l.b16 %v380
        %v467 = vunpack.c.h.b16 %v380
        %v468 = vunpack.c.l.b16 %v381
        %v469 = vunpack.c.h.b16 %v381
        %v470 = vunpack.c.l.b16 %v382
        %v471 = vunpack.c.h.b16 %v382
        %v472 = vunpack.c.l.b16 %v383
        %v473 = vunpack.c.h.b16 %v383
        %v474 = vunpack.c.l.b16 %v384
        %v475 = vunpack.c.h.b16 %v384
        %v476 = vunpack.c.l.b16 %v385
        %v477 = vunpack.c.h.b16 %v385
        %v478 = vunpack.c.l.b16 %v386
        %v479 = vunpack.c.h.b16 %v386
        %v480 = vunpack.c.l.b16 %v387
        %v481 = vunpack.c.h.b16 %v387
        %v482 = vunpack.c.l.b16 %v388
        %v483 = vunpack.c.h.b16 %v388
        %v484 = vunpack.c.l.b16 %v389
        %v485 = vunpack.c.h.b16 %v389
        %v486 = vunpack.c.l.b16 %v390
        %v487 = vunpack.c.h.b16 %v390
        %v488 = vunpack.c.l.b16 %v391
        %v489 = vunpack.c.h.b16 %v391
        %v490 = vunpack.c.l.b16 %v392
        %v491 = vunpack.c.h.b16 %v392
        %v492 = vunpack.c.l.b16 %v393
        %v493 = vunpack.c.h.b16 %v393
        %v494 = vunpack.c.l.b16 %v394
        %v495 = vunpack.c.h.b16 %v394
        %v496 = vunpack.c.l.b16 %v395
        %v497 = vunpack.c.h.b16 %v395
        %v498 = vunpack.c.l.b16 %v396
        %v499 = vunpack.c.h.b16 %v396
        %v500 = vunpack.c.l.b16 %v397
        %v501 = vunpack.c.h.b16 %v397
        %v502 = vunpack.c.l.b16 %v398
        %v503 = vunpack.c.h.b16 %v398
        %v504 = vunpack.c.l.b16 %v399
        %v505 = vunpack.c.h.b16 %v399
        %v506 = vunpack.c.l.b16 %v400
        %v507 = vunpack.c.h.b16 %v400
        %v508 = vunpack.c.l.b16 %v401
        %v509 = vunpack.c.h.b16 %v401
        %v510 = vunpack.c.l.b16 %v402
        %v511 = vunpack.c.h.b16 %v402
        %v512 = vunpack.c.l.b16 %v403
        %v513 = vunpack.c.h.b16 %v403
        %v514 = vunpack.c.l.b16 %v404
        %v515 = vunpack.c.h.b16 %v404
        %v516 = vunpack.c.l.b16 %v405
        %v517 = vunpack.c.h.b16 %v405
        %v518 = vunpack.c.l.b16 %v406
        %v519 = vunpack.c.h.b16 %v406
        %v520 = vunpack.c.l.b16 %v407
        %v521 = vunpack.c.h.b16 %v407
        %v522 = vunpack.c.l.b16 %v408
        %v523 = vunpack.c.h.b16 %v408
        %v524 = vunpack.c.l.b16 %v409
        %v525 = vunpack.c.h.b16 %v409
        %v526 = vunpack.c.l.b16 %v410
        %v527 = vunpack.c.h.b16 %v410
        %v528 = vunpack.c.l.b16 %v411
        %v529 = vunpack.c.h.b16 %v411
        %v530 = vpack.c.b16 %v468, %v466
        %v531 = vpack.c.b16 %v469, %v467
        %v532 = vpack.c.b16 %v472, %v470
        %v533 = vpack.c.b16 %v473, %v471
        %v534 = vpack.c.b16 %v476, %v474
        %v535 = vpack.c.b16 %v477, %v475
        %v536 = vpack.c.b16 %v480, %v478
        %v537 = vpack.c.b16 %v481, %v479
        %v538 = vpack.c.b16 %v484, %v482
        %v539 = vpack.c.b16 %v485, %v483
        %v540 = vpack.c.b16 %v488, %v486
        %v541 = vpack.c.b16 %v489, %v487
        %v542 = vpack.c.b16 %v492, %v490
        %v543 = vpack.c.b16 %v493, %v491
        %v544 = vpack.c.b16 %v496, %v494
        %v545 = vpack.c.b16 %v497, %v495
        %v546 = vpack.c.b16 %v500, %v498
        %v547 = vpack.c.b16 %v501, %v499
        %v548 = vpack.c.b16 %v504, %v502
        %v549 = vpack.c.b16 %v505, %v503
        %v550 = vpack.c.b16 %v508, %v506
        %v551 = vpack.c.b16 %v509, %v507
        %v552 = vpack.c.b16 %v512, %v510
        %v553 = vpack.c.b16 %v513, %v511
        %v554 = vpack.c.b16 %v516, %v514
        %v555 = vpack.c.b16 %v517, %v515
        %v556 = vpack.c.b16 %v520, %v518
        %v557 = vpack.c.b16 %v521, %v519
        %v558 = vpack.c.b16 %v524, %v522
        %v559 = vpack.c.b16 %v525, %v523
        %v560 = vpack.c.b16 %v528, %v526
        %v561 = vpack.c.b16 %v529, %v527
        %594 = vmatprep.subr.bf16.mxu0 %v531
        %595 = vmatpush1.bf16.msra.mxu0 %v530
        %596 = vmatprep.subr.bf16.mxu0 %v533
        %597 = vmatpush1.bf16.msra.mxu0 %v532
        %598 = vmatprep.subr.bf16.mxu0 %v535
        %599 = vmatpush1.bf16.msra.mxu0 %v534
        %600 = vmatprep.subr.bf16.mxu0 %v537
        %601 = vmatpush1.bf16.msra.mxu0 %v536
        %602 = vmatprep.subr.bf16.mxu0 %v539
        %603 = vmatpush1.bf16.msra.mxu0 %v538
        %604 = vmatprep.subr.bf16.mxu0 %v541
        %605 = vmatpush1.bf16.msra.mxu0 %v540
        %606 = vmatprep.subr.bf16.mxu0 %v543
        %607 = vmatpush1.bf16.msra.mxu0 %v542
        %608 = vmatprep.subr.bf16.mxu0 %v545
        %609 = vmatpush1.bf16.msra.mxu0 %v544
        %610 = vmatprep.subr.bf16.mxu0 %v547
        %611 = vmatpush1.bf16.msra.mxu0 %v546
        %612 = vmatprep.subr.bf16.mxu0 %v549
        %613 = vmatpush1.bf16.msra.mxu0 %v548
        %614 = vmatprep.subr.bf16.mxu0 %v551
        %615 = vmatpush1.bf16.msra.mxu0 %v550
        %616 = vmatprep.subr.bf16.mxu0 %v553
        %617 = vmatpush1.bf16.msra.mxu0 %v552
        %618 = vmatprep.subr.bf16.mxu0 %v555
        %619 = vmatpush1.bf16.msra.mxu0 %v554
        %620 = vmatprep.subr.bf16.mxu0 %v557
        %621 = vmatpush1.bf16.msra.mxu0 %v556
        %622 = vmatprep.subr.bf16.mxu0 %v559
        %623 = vmatpush1.bf16.msra.mxu0 %v558
        %624 = vmatprep.subr.bf16.mxu0 %v561
        %625 = vmatpush1.bf16.msra.mxu0 %v560
        %626 = vmatprep.mubr.bf16.mxu0 %v431
        %627 = vmatmul.mubr.bf16.gmra.mrb[0].mxu0 %v430
        %v628 = vpop.f32.mrb[0].mxu0
        %v629 = vadd.f32 %v417, %v628
        %v630 = vpop.f32.mrb[0].mxu0
        %v631 = vadd.f32 %v421, %v630
        %v632 = vpop.f32.mrb[0].mxu0
        %v633 = vadd.f32 %v417, %v632
        %v634 = vpop.f32.mrb[0].mxu0
        %v635 = vadd.f32 %v421, %v634
        %636 = vdwg.mxu0
        %v637 = vxor.u32 %v629, 2147483648
        %v638 = vxor.u32 %v633, 2147483648
        %v639 = vmul.f32 %v637, 1.442695
        %v640 = vpow.pop %v639
        %v641 = vmul.f32 %v638, 1.442695
        %v642 = vpow.pop %v641
        %v643 = vadd.f32 %v640, 1.0
        %v644 = vadd.f32 %v642, 1.0
        %v645 = vrcp.pop %v643
        %v646 = vmul.f32 1.0, %v645
        %v647 = vrcp.pop %v644
        %v648 = vmul.f32 1.0, %v647
        %v649 = vmul.f32 %v629, %v646
        %v650 = vmul.f32 %v633, %v648
        %v651 = vmul.f32 %v649, %v631
        %v652 = vmul.f32 %v650, %v635
        %v653 = vpack.c.bf16 %v652, %v651
        %v654 = vld [vmem:[#allocation2] sm:$0xff]
        %v655 = vld [vmem:[#allocation2 + $0x8] sm:$0xff]
        %v656 = vld [vmem:[#allocation2 + $0x10] sm:$0xff]
        %v657 = vld [vmem:[#allocation2 + $0x18] sm:$0xff]
        %v658 = vld [vmem:[%s307] sm:$0xff]
        %v659 = vld [vmem:[%s307 + $0x8] sm:$0xff]
        %v660 = vld [vmem:[%s307 + $0x10] sm:$0xff]
        %v661 = vld [vmem:[%s307 + $0x18] sm:$0xff]
        %v662 = vld [vmem:[%s307 + $0x20] sm:$0xff]
        %v663 = vld [vmem:[%s307 + $0x28] sm:$0xff]
        %v664 = vld [vmem:[%s307 + $0x30] sm:$0xff]
        %v665 = vld [vmem:[%s307 + $0x38] sm:$0xff]
        %v666 = vld [vmem:[%s307 + $0x40] sm:$0xff]
        %v667 = vld [vmem:[%s307 + $0x48] sm:$0xff]
        %v668 = vld [vmem:[%s307 + $0x50] sm:$0xff]
        %v669 = vld [vmem:[%s307 + $0x58] sm:$0xff]
        %v670 = vld [vmem:[%s307 + $0x60] sm:$0xff]
        %v671 = vld [vmem:[%s307 + $0x68] sm:$0xff]
        %v672 = vld [vmem:[%s307 + $0x70] sm:$0xff]
        %v673 = vld [vmem:[%s307 + $0x78] sm:$0xff]
        %v690 = vunpack.c.l.b16 %v658
        %v691 = vunpack.c.h.b16 %v658
        %v692 = vunpack.c.l.b16 %v659
        %v693 = vunpack.c.h.b16 %v659
        %v694 = vunpack.c.l.b16 %v660
        %v695 = vunpack.c.h.b16 %v660
        %v696 = vunpack.c.l.b16 %v661
        %v697 = vunpack.c.h.b16 %v661
        %v698 = vunpack.c.l.b16 %v662
        %v699 = vunpack.c.h.b16 %v662
        %v700 = vunpack.c.l.b16 %v663
        %v701 = vunpack.c.h.b16 %v663
        %v702 = vunpack.c.l.b16 %v664
        %v703 = vunpack.c.h.b16 %v664
        %v704 = vunpack.c.l.b16 %v665
        %v705 = vunpack.c.h.b16 %v665
        %v706 = vunpack.c.l.b16 %v666
        %v707 = vunpack.c.h.b16 %v666
        %v708 = vunpack.c.l.b16 %v667
        %v709 = vunpack.c.h.b16 %v667
        %v710 = vunpack.c.l.b16 %v668
        %v711 = vunpack.c.h.b16 %v668
        %v712 = vunpack.c.l.b16 %v669
        %v713 = vunpack.c.h.b16 %v669
        %v714 = vunpack.c.l.b16 %v670
        %v715 = vunpack.c.h.b16 %v670
        %v716 = vunpack.c.l.b16 %v671
        %v717 = vunpack.c.h.b16 %v671
        %v718 = vunpack.c.l.b16 %v672
        %v719 = vunpack.c.h.b16 %v672
        %v720 = vunpack.c.l.b16 %v673
        %v721 = vunpack.c.h.b16 %v673
        %v722 = vpack.c.b16 %v692, %v690
        %v723 = vpack.c.b16 %v693, %v691
        %v724 = vpack.c.b16 %v696, %v694
        %v725 = vpack.c.b16 %v697, %v695
        %v726 = vpack.c.b16 %v700, %v698
        %v727 = vpack.c.b16 %v701, %v699
        %v728 = vpack.c.b16 %v704, %v702
        %v729 = vpack.c.b16 %v705, %v703
        %v730 = vpack.c.b16 %v708, %v706
        %v731 = vpack.c.b16 %v709, %v707
        %v732 = vpack.c.b16 %v712, %v710
        %v733 = vpack.c.b16 %v713, %v711
        %v734 = vpack.c.b16 %v716, %v714
        %v735 = vpack.c.b16 %v717, %v715
        %v736 = vpack.c.b16 %v720, %v718
        %v737 = vpack.c.b16 %v721, %v719
        %754 = vmatprep.subr.bf16.mxu0 %v723
        %755 = vmatpush1.bf16.msra.mxu0 %v722
        %756 = vmatprep.subr.bf16.mxu0 %v725
        %757 = vmatpush1.bf16.msra.mxu0 %v724
        %758 = vmatprep.subr.bf16.mxu0 %v727
        %759 = vmatpush1.bf16.msra.mxu0 %v726
        %760 = vmatprep.subr.bf16.mxu0 %v729
        %761 = vmatpush1.bf16.msra.mxu0 %v728
        %762 = vmatprep.subr.bf16.mxu0 %v731
        %763 = vmatpush1.bf16.msra.mxu0 %v730
        %764 = vmatprep.subr.bf16.mxu0 %v733
        %765 = vmatpush1.bf16.msra.mxu0 %v732
        %766 = vmatprep.subr.bf16.mxu0 %v735
        %767 = vmatpush1.bf16.msra.mxu0 %v734
        %768 = vmatprep.subr.bf16.mxu0 %v737
        %769 = vmatpush1.bf16.msra.mxu0 %v736
        %770 = vmatprep.subr.bf16.mxu0 0
        %771 = vmatpush1.bf16.msra.mxu0 0
        %772 = vmatprep.subr.bf16.mxu0 0
        %773 = vmatpush1.bf16.msra.mxu0 0
        %774 = vmatprep.subr.bf16.mxu0 0
        %775 = vmatpush1.bf16.msra.mxu0 0
        %776 = vmatprep.subr.bf16.mxu0 0
        %777 = vmatpush1.bf16.msra.mxu0 0
        %778 = vmatprep.subr.bf16.mxu0 0
        %779 = vmatpush1.bf16.msra.mxu0 0
        %780 = vmatprep.subr.bf16.mxu0 0
        %781 = vmatpush1.bf16.msra.mxu0 0
        %782 = vmatprep.subr.bf16.mxu0 0
        %783 = vmatpush1.bf16.msra.mxu0 0
        %784 = vmatprep.subr.bf16.mxu0 0
        %785 = vmatpush1.bf16.msra.mxu0 0
        %786 = vmatprep.mubr.bf16.mxu0 0
        %787 = vmatmul.mubr.bf16.gmra.mrb[0].mxu0 %v653
        %v788 = vpop.f32.mrb[0].mxu0
        %v789 = vadd.f32 0.0, %v788
        %v790 = vpop.f32.mrb[0].mxu0
        %v791 = vadd.f32 0.0, %v790
        %v792 = vpop.f32.mrb[0].mxu0
        %v793 = vadd.f32 0.0, %v792
        %v794 = vpop.f32.mrb[0].mxu0
        %v795 = vadd.f32 0.0, %v794
        %796 = vdwg.mxu0
        %v797 = vadd.f32 %v654, %v789
        %v798 = vadd.f32 %v655, %v791
        %v799 = vadd.f32 %v656, %v793
        %v800 = vadd.f32 %v657, %v795
        %801 = vst [vmem:[#allocation2] sm:$0xff] %v797
        %802 = vst [vmem:[#allocation2 + $0x8] sm:$0xff] %v798
        %803 = vst [vmem:[#allocation2 + $0x10] sm:$0xff] %v799
        %804 = vst [vmem:[#allocation2 + $0x18] sm:$0xff] %v800
        %p805 = scmp.eq.s32.totalorder %s30, 1
        // Predicated region
        $region57: #{tpu_custom_call.1} parent=39 // pred_check
          %p806 = pneg %p805
        $region58: #{tpu_custom_call.1} parent=39 // pred_check_branch
          %808 = sbr.rel (%p806) target = $region60
        $region59: #{tpu_custom_call.1} parent=39 // pred_region
          %v809 = vld [vmem:[#allocation2] sm:$0xff]
          %v810 = vld [vmem:[#allocation2 + $0x8] sm:$0xff]
          %v811 = vld [vmem:[#allocation2 + $0x10] sm:$0xff]
          %v812 = vld [vmem:[#allocation2 + $0x18] sm:$0xff]
          %v813 = vpack.c.bf16 %v811, %v809
          %v814 = vpack.c.bf16 %v812, %v810
          %v817 = vunpack.c.l.b16 %v813
          %v818 = vunpack.c.l.b16 %v814
          %v819 = vunpack.c.h.b16 %v813
          %v820 = vunpack.c.h.b16 %v814
          %v821 = vpack.c.b16 %v818, %v817
          %v822 = vpack.c.b16 %v820, %v819
          %825 = vst [vmem:[%s347] sm:$0xff] %v821
          %826 = vst [vmem:[%s347 + $0x8] sm:$0xff] %v822
        $region60: #{tpu_custom_call.1} parent=39 // pred_fallthru
          _
        %s827 = sand.u32 %s170, 1
        %s828 = scalar_lea.sflag [#allocation5], %s827
        %s829 = sand.u32 %s170, 1
        %s830 = smul.addr %s829, 16
        %s831 = scalar_lea.vmem [#allocation9], %s830
        // Predicated region
        $region61: #{tpu_custom_call.1} parent=39 // pred_check
          %p832 = pneg %p180
        $region62: #{tpu_custom_call.1} parent=39 // pred_check_branch
          %834 = sbr.rel (%p832) target = $region64
        $region63: #{tpu_custom_call.1} parent=39 // pred_region
          %s835 = smul.u32 2, %s29
          %s837 = ssub.s32 256, 256
          %838 = vsyncadd %s828, %s837
          %s839 = smul.addr %s835, 2
          %s840 = smul.addr %s839, 64
          %s841 = scalar_lea.hbm %s5, %s840
          %s842 = sshll.u32 %s831, 4
          %s843 = int_to_ptr.vmem [resolvable:$true] %s842
          %848 = dma.vmem_to_hbm [thread:$0]  %s843, 256, %s841, %s828, 128, 128, 8
        $region64: #{tpu_custom_call.1} parent=39 // pred_fallthru
          _
      $region40: #{tpu_custom_call.1} parent=5 // pred_fallthru
        _
      %p849 = scmp.le.s32.totalorder 2, %s20
      // Predicated region
      $region65: #{tpu_custom_call.1} parent=5 // pred_check
        %p850 = pneg %p849
      $region66: #{tpu_custom_call.1} parent=5 // pred_check_branch
        %852 = sbr.rel (%p850) target = $region68
      $region67: #{tpu_custom_call.1} parent=5 // pred_region
        %s853 = ssub.s32 %s20, 2
        // Predicated region
        $region69: #{tpu_custom_call.1} parent=67 // pred_check
          %p854 = pneg %p186
        $region70: #{tpu_custom_call.1} parent=67 // pred_check_branch
          %856 = sbr.rel (%p854) target = $region72
        $region71: #{tpu_custom_call.1} parent=67 // pred_region
          %s857 = sand.u32 %s171, 1
          %s858 = scalar_lea.sflag [#allocation5], %s857
          %s859 = sand.u32 %s171, 1
          %s860 = smul.addr %s859, 16
          %s861 = scalar_lea.vmem [#allocation9], %s860
          %862 = dma.done %s858, 256
        $region72: #{tpu_custom_call.1} parent=67 // pred_fallthru
          _
      $region68: #{tpu_custom_call.1} parent=5 // pred_fallthru
        _
    $region6: #{tpu_custom_call.1} parent=1 // loop_footer
      %s24 = sadd.s32 1, %s20
    $region7: #{tpu_custom_call.1} parent=1 // loop_footer_branch
      %19 = sbr.rel target = $region3
    $region8: #{tpu_custom_call.1} parent=1 // loop_exit
      _
    %863 = vsyncpa [#allocation4], 1
    %s864 = scalar_lea.sflag [#allocation4], 1
    %865 = vsyncpa %s864, 1
    %866 = vsyncpa [#allocation7], 1
    %s867 = scalar_lea.sflag [#allocation7], 1
    %868 = vsyncpa %s867, 1
    %869 = vsyncpa [#allocation5], 1
    %s870 = scalar_lea.sflag [#allocation5], 1
    %871 = vsyncpa %s870, 1

</llo_original>
